<compile_context>
chip_gen: v7x
topology: tpu7x:2x2x1
jax: 0.10.0
libtpu: 0.0.40
codegen_flags: <defaults>
</compile_context>

<pallas_src>
import functools

import jax
import jax.numpy as jnp
from jax import lax
from jax.experimental import pallas as pl
from jax.experimental.pallas import tpu as pltpu

_CHUNK = 512  # lanes per register-resident inner chunk (4 x 128)


def _round_up(n, m):
    return pl.cdiv(n, m) * m


def _mlp_kernel(x_ref, w1_ref, b1_ref, w3_ref, b3_ref, wo_ref, bo_ref, o_ref,
                *, chunk):
    act = x_ref.dtype

    # Resident weights/biases: read once per grid step, reused by every chunk
    # (hoisted out of the inner loop; JAX does not CSE broadcast_in_dim).
    w1 = w1_ref[...]   # (L, 2)   activation dtype (f32 or bf16)
    w3 = w3_ref[...]   # (2, L)
    wo = wo_ref[...]   # (1, 2)
    b1 = b1_ref[...]   # (L, 1)   f32
    b3 = b3_ref[...]   # (2, 1)   f32
    bo = bo_ref[...]   # (1, 1)   f32

    tile = x_ref.shape[1]
    n_chunks = tile // chunk   # wrapper guarantees tile % chunk == 0

    def body(c, carry):
        off = pl.multiple_of(c * chunk, chunk)
        x = x_ref[:, pl.ds(off, chunk)]                              # (2, chunk)

        # Layer 1 (2 -> L): MXU dot (K=2 padding is free — extended slots idle),
        # bias + ReLU on the VPU; h1 stays in vregs (16 vregs at L=32).
        h1 = jnp.dot(w1, x, preferred_element_type=jnp.float32) + b1
        h1 = jnp.maximum(h1, 0.0).astype(act)                        # (L, chunk)

        # Layer 3 (L -> 2): MXU dot, lane-dense along the batch.
        h2 = jnp.dot(w3, h1, preferred_element_type=jnp.float32) + b3
        h2 = jnp.maximum(h2, 0.0).astype(act)                        # (2, chunk)

        # Output layer (2 -> 1): tiny dot also rides the idle MXU slot.
        out = jnp.dot(wo, h2, preferred_element_type=jnp.float32) + bo
        o_ref[:, pl.ds(off, chunk)] = out.astype(o_ref.dtype)        # (1, chunk)
        return carry

    lax.fori_loop(0, n_chunks, body, 0, unroll=min(n_chunks, 4))


@functools.partial(jax.jit, static_argnames=("tile_b", "act_dtype"))
def linear_relu_noact(x, params, tile_b=8192, act_dtype=jnp.float32):
    """x: (B, 2) float32 (torch layout). Returns (B, 1) float32.

    params (see init_params) carry torch-shaped weights:
      w1 (L,2)  b1 (L,1)  w3 (2,L)  b3 (2,1)  wo (1,2)  bo (1,1)

    act_dtype=jnp.bfloat16 is recommended on v6e/v7x; keep f32 on v5e.
    """
    w1, b1, w3, b3, wo, bo = (
        params["w1"], params["b1"],
        params["w3"], params["b3"],
        params["wo"], params["bo"],
    )
    B = x.shape[0]
    L = w1.shape[0]

    chunk = _CHUNK
    tile_b = max(int(tile_b), chunk)

    # Pad the batch only to the chunk granularity (not to a whole tile) ...
    bp = _round_up(B, chunk)
    # ... then derive the grid: tiles stay <= tile_b, and when there is enough
    # work we keep >= 2 grid steps so "parallel" can shard across v7x's 2 TCs.
    n_steps = max(pl.cdiv(bp, tile_b), 2 if bp >= 2 * chunk else 1)
    tile = _round_up(pl.cdiv(bp, n_steps), chunk)
    bp = n_steps * tile

    # Feature-major ("batch on lanes") input; single fused pad of the transpose.
    # TODO(synk): accept x pre-staged as (2, B) feature-major to drop this copy.
    xf = jnp.pad(x.T.astype(act_dtype), ((0, 0), (0, bp - B)))

    # MXU inputs in the activation dtype; biases stay f32 (added to f32 acc).
    w1a = w1.astype(act_dtype)
    w3a = w3.astype(act_dtype)
    woa = wo.astype(act_dtype)
    b1f = b1.astype(jnp.float32)
    b3f = b3.astype(jnp.float32)
    bof = bo.astype(jnp.float32)

    kernel = functools.partial(_mlp_kernel, chunk=chunk)
    out = pl.pallas_call(
        kernel,
        out_shape=jax.ShapeDtypeStruct((1, bp), jnp.float32),
        grid=(n_steps,),
        in_specs=[
            pl.BlockSpec((2, tile), lambda i: (0, i)),   # x, lane-dense batch tile
            pl.BlockSpec((L, 2), lambda i: (0, 0)),      # w1 (VMEM-resident)
            pl.BlockSpec((L, 1), lambda i: (0, 0)),      # b1
            pl.BlockSpec((2, L), lambda i: (0, 0)),      # w3
            pl.BlockSpec((2, 1), lambda i: (0, 0)),      # b3
            pl.BlockSpec((1, 2), lambda i: (0, 0)),      # wo
            pl.BlockSpec((1, 1), lambda i: (0, 0)),      # bo
        ],
        out_specs=pl.BlockSpec((1, tile), lambda i: (0, i)),  # lane-dense output
        compiler_params=pltpu.CompilerParams(
            dimension_semantics=("parallel",),
        ),
    )(xf, w1a, b1f, w3a, b3f, woa, bof)

    # Back to torch layout; drop the padded batch columns (they hold garbage
    # from relu(b1) flowing through the padded lanes — must stay sliced off).
    return out[:, :B].T


def init_params(key, l):
    """Deterministic torch-nn.Linear-style init: U(-1/sqrt(fan_in), 1/sqrt(fan_in)).

    Weights kept in torch (out, in) layout; biases kept as 2-D columns for
    TPU-friendly broadcasting inside the kernel.
    """
    k = jax.random.split(key, 6)

    def uni(rng, shape, fan_in):
        bound = 1.0 / jnp.sqrt(jnp.float32(fan_in))
        return jax.random.uniform(rng, shape, jnp.float32, -bound, bound)

    return {
        "w1": uni(k[0], (l, 2), 2),
        "b1": uni(k[1], (l, 1), 2),
        "w3": uni(k[2], (2, l), l),
        "b3": uni(k[3], (2, 1), l),
        "wo": uni(k[4], (1, 2), 2),
        "bo": uni(k[5], (1, 1), 2),
    }


def _reference(x, p):
    h = jnp.maximum(x @ p["w1"].T + p["b1"][:, 0], 0.0)
    h = jnp.maximum(h @ p["w3"].T + p["b3"][:, 0], 0.0)
    return h @ p["wo"].T + p["bo"][:, 0]


if __name__ == "__main__":
    key = jax.random.PRNGKey(0)
    kx, kp, kx2, kx3 = jax.random.split(key, 4)

    L = 32  # hidden width l
    params = init_params(kp, L)

    # Small shape: single grid step, single inner chunk.
    x = jax.random.normal(kx, (8, 2), dtype=jnp.float32)
    out = jax.block_until_ready(linear_relu_noact(x, params))
    ref = _reference(x, params)
    assert out.shape == (8, 1)
    assert jnp.allclose(out, ref, atol=1e-4, rtol=1e-4)

    # Multi-step grid with a ragged batch (pads only to the 512-lane chunk).
    x2 = jax.random.normal(kx2, (1300, 2), dtype=jnp.float32)
    out2 = jax.block_until_ready(linear_relu_noact(x2, params, tile_b=512))
    ref2 = _reference(x2, params)
    assert out2.shape == (1300, 1)
    assert jnp.allclose(out2, ref2, atol=1e-4, rtol=1e-4)

    # Default tile size: multi-chunk inner loop (partially unrolled) + 2 TC grid.
    x3 = jax.random.normal(kx3, (4396, 2), dtype=jnp.float32)
    out3 = jax.block_until_ready(linear_relu_noact(x3, params))
    ref3 = _reference(x3, params)
    assert out3.shape == (4396, 1)
    assert jnp.allclose(out3, ref3, atol=1e-4, rtol=1e-4)

    # Optional bf16-activation path (v6e/v7x); f32 accumulation keeps error small.
    out4 = jax.block_until_ready(
        linear_relu_noact(x3, params, act_dtype=jnp.bfloat16))
    assert out4.shape == (4396, 1)
    assert jnp.allclose(out4, ref3, atol=5e-2, rtol=5e-2)

    print("KERNEL_OK")
</pallas_src>

<mosaic_0001>
module attributes {stable_mosaic.version = 11 : i64} {
  func.func @_mlp_kernel(%arg0: i32, %arg1: memref<2x512xf32, #tpu.memory_space<vmem>>, %arg2: memref<32x2xf32, #tpu.memory_space<vmem>>, %arg3: memref<32x1xf32, #tpu.memory_space<vmem>>, %arg4: memref<2x32xf32, #tpu.memory_space<vmem>>, %arg5: memref<2x1xf32, #tpu.memory_space<vmem>>, %arg6: memref<1x2xf32, #tpu.memory_space<vmem>>, %arg7: memref<1x1xf32, #tpu.memory_space<vmem>>, %arg8: memref<1x512xf32, #tpu.memory_space<vmem>>) attributes {dimension_semantics = [#tpu.dimension_semantics<parallel>], iteration_bounds = array<i64: 1>, scalar_prefetch = 0 : i64, scratch_operands = 0 : i64, tpu.core_type = #tpu.core_type<tc>, window_params = [{transform_indices = @transform_0, window_bounds = array<i64: 2, 512>}, {pipeline_mode = #tpu.pipeline_mode<synchronous>, transform_indices = @transform_1, window_bounds = array<i64: 32, 2>}, {pipeline_mode = #tpu.pipeline_mode<synchronous>, transform_indices = @transform_2, window_bounds = array<i64: 32, 1>}, {pipeline_mode = #tpu.pipeline_mode<synchronous>, transform_indices = @transform_3, window_bounds = array<i64: 2, 32>}, {pipeline_mode = #tpu.pipeline_mode<synchronous>, transform_indices = @transform_4, window_bounds = array<i64: 2, 1>}, {pipeline_mode = #tpu.pipeline_mode<synchronous>, transform_indices = @transform_5, window_bounds = array<i64: 1, 2>}, {pipeline_mode = #tpu.pipeline_mode<synchronous>, transform_indices = @transform_6, window_bounds = array<i64: 1, 1>}, {transform_indices = @transform_7, window_bounds = array<i64: 1, 512>}]} {
    %c0 = arith.constant 0 : index
    %c0_0 = arith.constant 0 : index
    %0 = vector.load %arg2[%c0, %c0_0] : memref<32x2xf32, #tpu.memory_space<vmem>>, vector<32x2xf32>
    %c0_1 = arith.constant 0 : index
    %c0_2 = arith.constant 0 : index
    %1 = vector.load %arg4[%c0_1, %c0_2] : memref<2x32xf32, #tpu.memory_space<vmem>>, vector<2x32xf32>
    %c0_3 = arith.constant 0 : index
    %c0_4 = arith.constant 0 : index
    %2 = vector.load %arg6[%c0_3, %c0_4] : memref<1x2xf32, #tpu.memory_space<vmem>>, vector<1x2xf32>
    %c0_5 = arith.constant 0 : index
    %c0_6 = arith.constant 0 : index
    %3 = vector.load %arg3[%c0_5, %c0_6] : memref<32x1xf32, #tpu.memory_space<vmem>>, vector<32x1xf32>
    %c0_7 = arith.constant 0 : index
    %c0_8 = arith.constant 0 : index
    %4 = vector.load %arg5[%c0_7, %c0_8] : memref<2x1xf32, #tpu.memory_space<vmem>>, vector<2x1xf32>
    %c0_9 = arith.constant 0 : index
    %c0_10 = arith.constant 0 : index
    %5 = vector.load %arg7[%c0_9, %c0_10] : memref<1x1xf32, #tpu.memory_space<vmem>>, vector<1x1xf32>
    %c0_i32 = arith.constant 0 : i32
    %c512_i32 = arith.constant 512 : i32
    %6 = arith.muli %c0_i32, %c512_i32 : i32
    %7 = tpu.assume_multiple %6, 512 : i32
    %c0_11 = arith.constant 0 : index
    %8 = arith.index_cast %7 : i32 to index
    %9 = vector.load %arg1[%c0_11, %8] : memref<2x512xf32, #tpu.memory_space<vmem>>, vector<2x512xf32>
    %cst = arith.constant dense<0.000000e+00> : vector<32x512xf32>
    %10 = tpu.matmul %0, %9, %cst {dimension_numbers = #tpu.dot_dimension_numbers<[1], [0], [0], [1], [0, 0, 1, 1], [], []>} : vector<32x2xf32>, vector<2x512xf32>, vector<32x512xf32> -> vector<32x512xf32>
    %11 = vector.broadcast %3 : vector<32x1xf32> to vector<32x512xf32>
    %12 = arith.addf %10, %11 : vector<32x512xf32>
    %cst_12 = arith.constant 0.000000e+00 : f32
    %13 = vector.broadcast %cst_12 : f32 to vector<32x512xf32>
    %14 = arith.maximumf %12, %13 : vector<32x512xf32>
    %cst_13 = arith.constant dense<0.000000e+00> : vector<2x512xf32>
    %15 = tpu.matmul %1, %14, %cst_13 {dimension_numbers = #tpu.dot_dimension_numbers<[1], [0], [0], [1], [0, 0, 1, 1], [], []>} : vector<2x32xf32>, vector<32x512xf32>, vector<2x512xf32> -> vector<2x512xf32>
    %16 = vector.broadcast %4 : vector<2x1xf32> to vector<2x512xf32>
    %17 = arith.addf %15, %16 : vector<2x512xf32>
    %cst_14 = arith.constant 0.000000e+00 : f32
    %18 = vector.broadcast %cst_14 : f32 to vector<2x512xf32>
    %19 = arith.maximumf %17, %18 : vector<2x512xf32>
    %cst_15 = arith.constant dense<0.000000e+00> : vector<1x512xf32>
    %20 = tpu.matmul %2, %19, %cst_15 {dimension_numbers = #tpu.dot_dimension_numbers<[1], [0], [0], [1], [0, 0, 1, 1], [], []>} : vector<1x2xf32>, vector<2x512xf32>, vector<1x512xf32> -> vector<1x512xf32>
    %21 = vector.broadcast %5 : vector<1x1xf32> to vector<1x512xf32>
    %22 = arith.addf %20, %21 : vector<1x512xf32>
    %c0_16 = arith.constant 0 : index
    %23 = arith.index_cast %7 : i32 to index
    %24 = vector.load %arg8[%c0_16, %23] : memref<1x512xf32, #tpu.memory_space<vmem>>, vector<1x512xf32>
    tpu.vector_store %arg8[%c0_16, %23], %22 {strides = array<i32>} : memref<1x512xf32, #tpu.memory_space<vmem>>, vector<1x512xf32>,
    %c1_i32 = arith.constant 1 : i32
    return
  }
  func.func @transform_0(%arg0: i32) -> (i32, i32) {
    %c0_i32 = arith.constant 0 : i32
    %c0_i32_0 = arith.constant 0 : i32
    return %c0_i32, %arg0 : i32, i32
  }
  func.func @transform_1(%arg0: i32) -> (i32, i32) {
    %c0_i32 = arith.constant 0 : i32
    %c0_i32_0 = arith.constant 0 : i32
    %c0_i32_1 = arith.constant 0 : i32
    return %c0_i32, %c0_i32_0 : i32, i32
  }
  func.func @transform_2(%arg0: i32) -> (i32, i32) {
    %c0_i32 = arith.constant 0 : i32
    %c0_i32_0 = arith.constant 0 : i32
    %c0_i32_1 = arith.constant 0 : i32
    return %c0_i32, %c0_i32_0 : i32, i32
  }
  func.func @transform_3(%arg0: i32) -> (i32, i32) {
    %c0_i32 = arith.constant 0 : i32
    %c0_i32_0 = arith.constant 0 : i32
    %c0_i32_1 = arith.constant 0 : i32
    return %c0_i32, %c0_i32_0 : i32, i32
  }
  func.func @transform_4(%arg0: i32) -> (i32, i32) {
    %c0_i32 = arith.constant 0 : i32
    %c0_i32_0 = arith.constant 0 : i32
    %c0_i32_1 = arith.constant 0 : i32
    return %c0_i32, %c0_i32_0 : i32, i32
  }
  func.func @transform_5(%arg0: i32) -> (i32, i32) {
    %c0_i32 = arith.constant 0 : i32
    %c0_i32_0 = arith.constant 0 : i32
    %c0_i32_1 = arith.constant 0 : i32
    return %c0_i32, %c0_i32_0 : i32, i32
  }
  func.func @transform_6(%arg0: i32) -> (i32, i32) {
    %c0_i32 = arith.constant 0 : i32
    %c0_i32_0 = arith.constant 0 : i32
    %c0_i32_1 = arith.constant 0 : i32
    return %c0_i32, %c0_i32_0 : i32, i32
  }
  func.func @transform_7(%arg0: i32) -> (i32, i32) {
    %c0_i32 = arith.constant 0 : i32
    %c0_i32_0 = arith.constant 0 : i32
    return %c0_i32, %arg0 : i32, i32
  }
}

</mosaic_0001>

<llo_original>
// kernel: linear_relu_noact.1
$region0: #{linear_relu_noact.1}
  #allocation0 [shape = 'u32[]', space=smem, size = 0x4, offset = 0x4, fixed_abs, tag = 'smem constant byte address 0x4 - core index']
  #allocation1 [shape = 'u32[144,128]{1,0:T(1,128)}', space=vmem, size = 0x12000, scoped, tag = 'internal scratch']
  #allocation2 [shape = 'f32[1,1]{1,0:T(1,128)S(1)}', space=vmem, size = 0x200, scoped, tag = 'scoped memory for linear_relu_noact.1']
  %s0 = inlined_call_operand.vmem [shape: f32[2,512], index: 0, kind: input, shape index: {}]
  %s1 = inlined_call_operand.vmem [shape: f32[32,2], index: 1, kind: input, shape index: {}]
  %s2 = inlined_call_operand.vmem [shape: f32[32,1], index: 2, kind: input, shape index: {}]
  %s3 = inlined_call_operand.vmem [shape: f32[2,32], index: 3, kind: input, shape index: {}]
  %s4 = inlined_call_operand.vmem [shape: f32[2,1], index: 4, kind: input, shape index: {}]
  %s5 = inlined_call_operand.vmem [shape: f32[1,2], index: 5, kind: input, shape index: {}]
  %s6 = inlined_call_operand.<no memory space> [shape: f32[1,1], index: 6, kind: input, shape index: {}]
  %s7 = inlined_call_operand.vmem [shape: f32[1,512], index: 7, kind: output, shape index: {}]
  %s8 = sld [smem:[#allocation0]]
  $region38: #{linear_relu_noact.1} parent=0
    _
  %s10 = ssub.s32 1, %s8
  %s11 = scalar_select 0, %s10, %s8
  %v12 = vstv %s6
  %13 = vst [vmem:[#allocation2] sm:$0x1] %v12
  // Predicated region
  $region2: #{linear_relu_noact.1} parent=0 // pred_check
    _
  $region3: #{linear_relu_noact.1} parent=0 // pred_check_branch
    %15 = sbr.rel (0) target = $region5
  $region4: #{linear_relu_noact.1} parent=0 // pred_region
    _
  $region5: #{linear_relu_noact.1} parent=0 // pred_fallthru
    _
  // Predicated region
  $region6: #{linear_relu_noact.1} parent=0 // pred_check
    _
  $region7: #{linear_relu_noact.1} parent=0 // pred_check_branch
    %17 = sbr.rel (0) target = $region9
  $region8: #{linear_relu_noact.1} parent=0 // pred_region
    _
  $region9: #{linear_relu_noact.1} parent=0 // pred_fallthru
    _
  // Predicated region
  $region10: #{linear_relu_noact.1} parent=0 // pred_check
    _
  $region11: #{linear_relu_noact.1} parent=0 // pred_check_branch
    %19 = sbr.rel (0) target = $region13
  $region12: #{linear_relu_noact.1} parent=0 // pred_region
    _
  $region13: #{linear_relu_noact.1} parent=0 // pred_fallthru
    _
  // Predicated region
  $region14: #{linear_relu_noact.1} parent=0 // pred_check
    _
  $region15: #{linear_relu_noact.1} parent=0 // pred_check_branch
    %21 = sbr.rel (0) target = $region17
  $region16: #{linear_relu_noact.1} parent=0 // pred_region
    _
  $region17: #{linear_relu_noact.1} parent=0 // pred_fallthru
    _
  // Predicated region
  $region18: #{linear_relu_noact.1} parent=0 // pred_check
    _
  $region19: #{linear_relu_noact.1} parent=0 // pred_check_branch
    %23 = sbr.rel (0) target = $region21
  $region20: #{linear_relu_noact.1} parent=0 // pred_region
    _
  $region21: #{linear_relu_noact.1} parent=0 // pred_fallthru
    _
  // Predicated region
  $region22: #{linear_relu_noact.1} parent=0 // pred_check
    _
  $region23: #{linear_relu_noact.1} parent=0 // pred_check_branch
    %25 = sbr.rel (0) target = $region25
  $region24: #{linear_relu_noact.1} parent=0 // pred_region
    _
  $region25: #{linear_relu_noact.1} parent=0 // pred_fallthru
    _
  // Predicated region
  $region26: #{linear_relu_noact.1} parent=0 // pred_check
    _
  $region27: #{linear_relu_noact.1} parent=0 // pred_check_branch
    %27 = sbr.rel (0) target = $region29
  $region28: #{linear_relu_noact.1} parent=0 // pred_region
    _
  $region29: #{linear_relu_noact.1} parent=0 // pred_fallthru
    _
  %v28 = vld [vmem:[%s1] sm:$0xff]
  %v29 = vld [vmem:[%s1 + $0x8] sm:$0xff]
  %v30 = vld [vmem:[%s1 + $0x10] sm:$0xff]
  %v31 = vld [vmem:[%s1 + $0x18] sm:$0xff]
  %v32 = vld [vmem:[%s3] sm:$0x3]
  %v33 = vld [vmem:[%s5] sm:$0x1]
  %v34 = vld [vmem:[%s2] sm:$0xff]
  %v35 = vld [vmem:[%s2 + $0x8] sm:$0xff]
  %v36 = vld [vmem:[%s2 + $0x10] sm:$0xff]
  %v37 = vld [vmem:[%s2 + $0x18] sm:$0xff]
  %v38 = vld [vmem:[%s4] sm:$0x3]
  %v39 = vld [vmem:[#allocation2] sm:$0x1]
  %v40 = vld [vmem:[%s0] sm:$0xff]
  %42 = vset.pattern.permute.xlu0 0
  %43 = vperm.xlu0 %42, %v34
  %v44 = vpop.permute.xlu0 %43
  %47 = vset.pattern.permute.xlu0 0
  %48 = vperm.xlu0 %47, %v35
  %v49 = vpop.permute.xlu0 %48
  %52 = vset.pattern.permute.xlu0 0
  %53 = vperm.xlu0 %52, %v36
  %v54 = vpop.permute.xlu0 %53
  %57 = vset.pattern.permute.xlu0 0
  %58 = vperm.xlu0 %57, %v37
  %v59 = vpop.permute.xlu0 %58
  %v62 = vcombine.high %v40, %v40
  %v64 = vunpack.c.l.s4 1983009808
  %v65 = vunpack.c.0.s8 %v64
  %v66 = vlaneseq
  %v67 = vshrl.u32 %v66, 7
  %v68 = vsub.s32 %v65, %v67
  %v69 = vrot.slane %v40, %v68
  %v71 = vunpack.c.l.s4 1983009808
  %v72 = vunpack.c.0.s8 %v71
  %v73 = vlaneseq
  %v74 = vshrl.u32 %v73, 7
  %v75 = vsub.s32 %v72, %v74
  %v76 = vrot.slane %v62, %v75
  %v77 = vcombine.high %v69, %v69
  %v78 = vcombine.high %v76, %v76
  %vm79 = vcmask 15360
  %v81 = vsel %vm79, %v28, 0
  %v84 = vsel %vm79, %v29, 0
  %v87 = vsel %vm79, %v30, 0
  %v90 = vsel %vm79, %v31, 0
  %vm92 = vcmask 1041408
  %v93 = vsel %vm92, %v69, 0
  %v95 = vsel %vm92, %v77, 0
  %v97 = vsel %vm92, %v76, 0
  %v99 = vsel %vm92, %v78, 0
  %101 = vmatprep.subr.mxu0 %v95
  %102 = vmatpush1.msra.mxu0 %v93
  %103 = vmatprep.subr.mxu0 0.0
  %104 = vmatpush1.msra.mxu0 0.0
  %105 = vmatprep.subr.mxu0 0.0
  %106 = vmatpush1.msra.mxu0 0.0
  %107 = vmatprep.subr.mxu0 0.0
  %108 = vmatpush1.msra.mxu0 0.0
  %109 = vmatprep.subr.mxu0 0.0
  %110 = vmatpush1.msra.mxu0 0.0
  %111 = vmatprep.subr.mxu0 0.0
  %112 = vmatpush1.msra.mxu0 0.0
  %113 = vmatprep.subr.mxu0 0.0
  %114 = vmatpush1.msra.mxu0 0.0
  %115 = vmatprep.subr.mxu0 0.0
  %116 = vmatpush1.msra.mxu0 0.0
  %117 = vmatprep.subr.mxu0 0.0
  %118 = vmatpush1.msra.mxu0 0.0
  %119 = vmatprep.subr.mxu0 0.0
  %120 = vmatpush1.msra.mxu0 0.0
  %121 = vmatprep.subr.mxu0 0.0
  %122 = vmatpush1.msra.mxu0 0.0
  %123 = vmatprep.subr.mxu0 0.0
  %124 = vmatpush1.msra.mxu0 0.0
  %125 = vmatprep.subr.mxu0 0.0
  %126 = vmatpush1.msra.mxu0 0.0
  %127 = vmatprep.subr.mxu0 0.0
  %128 = vmatpush1.msra.mxu0 0.0
  %129 = vmatprep.subr.mxu0 0.0
  %130 = vmatpush1.msra.mxu0 0.0
  %131 = vmatprep.subr.mxu0 0.0
  %132 = vmatpush1.msra.mxu0 0.0
  %133 = vmatprep.subr.mxu0 0.0
  %134 = vmatpush1.msra.mxu0 0.0
  %135 = vmatprep.subr.mxu0 0.0
  %136 = vmatpush1.msra.mxu0 0.0
  %137 = vmatprep.subr.mxu0 0.0
  %138 = vmatpush1.msra.mxu0 0.0
  %139 = vmatprep.subr.mxu0 0.0
  %140 = vmatpush1.msra.mxu0 0.0
  %141 = vmatprep.subr.mxu0 0.0
  %142 = vmatpush1.msra.mxu0 0.0
  %143 = vmatprep.subr.mxu0 0.0
  %144 = vmatpush1.msra.mxu0 0.0
  %145 = vmatprep.subr.mxu0 0.0
  %146 = vmatpush1.msra.mxu0 0.0
  %147 = vmatprep.subr.mxu0 0.0
  %148 = vmatpush1.msra.mxu0 0.0
  %149 = vmatprep.subr.mxu0 0.0
  %150 = vmatpush1.msra.mxu0 0.0
  %151 = vmatprep.subr.mxu0 0.0
  %152 = vmatpush1.msra.mxu0 0.0
  %153 = vmatprep.subr.mxu0 0.0
  %154 = vmatpush1.msra.mxu0 0.0
  %155 = vmatprep.subr.mxu0 0.0
  %156 = vmatpush1.msra.mxu0 0.0
  %157 = vmatprep.subr.mxu0 0.0
  %158 = vmatpush1.msra.mxu0 0.0
  %159 = vmatprep.subr.mxu0 0.0
  %160 = vmatpush1.msra.mxu0 0.0
  %161 = vmatprep.subr.mxu0 0.0
  %162 = vmatpush1.msra.mxu0 0.0
  %163 = vmatprep.subr.mxu0 0.0
  %164 = vmatpush1.msra.mxu0 0.0
  %165 = vmatprep.mubr.f32.mxu0 0.0
  %166 = vmatmul.mubr.f32.gmra.mrb[0].mxu0 %v81
  %v167 = vpop.f32.mrb[0].mxu0
  %v168 = vadd.f32 %v44, %v167
  %v169 = vpop.f32.mrb[0].mxu0
  %v170 = vadd.f32 %v44, %v169
  %171 = vmatprep.mubr.f32.mxu0 0.0
  %172 = vmatmul.mubr.f32.gmra.mrb[0].mxu0 %v84
  %v173 = vpop.f32.mrb[0].mxu0
  %v174 = vadd.f32 %v49, %v173
  %v175 = vpop.f32.mrb[0].mxu0
  %v176 = vadd.f32 %v49, %v175
  %177 = vmatprep.mubr.f32.mxu0 0.0
  %178 = vmatmul.mubr.f32.gmra.mrb[0].mxu0 %v87
  %v179 = vpop.f32.mrb[0].mxu0
  %v180 = vadd.f32 %v54, %v179
  %v181 = vpop.f32.mrb[0].mxu0
  %v182 = vadd.f32 %v54, %v181
  %183 = vmatprep.mubr.f32.mxu0 0.0
  %184 = vmatmul.mubr.f32.gmra.mrb[0].mxu0 %v90
  %v185 = vpop.f32.mrb[0].mxu0
  %v186 = vadd.f32 %v59, %v185
  %v187 = vpop.f32.mrb[0].mxu0
  %v188 = vadd.f32 %v59, %v187
  %189 = vdwg.mxu0
  %190 = vmatprep.subr.mxu0 %v99
  %191 = vmatpush1.msra.mxu0 %v97
  %192 = vmatprep.subr.mxu0 0.0
  %193 = vmatpush1.msra.mxu0 0.0
  %194 = vmatprep.subr.mxu0 0.0
  %195 = vmatpush1.msra.mxu0 0.0
  %196 = vmatprep.subr.mxu0 0.0
  %197 = vmatpush1.msra.mxu0 0.0
  %198 = vmatprep.subr.mxu0 0.0
  %199 = vmatpush1.msra.mxu0 0.0
  %200 = vmatprep.subr.mxu0 0.0
  %201 = vmatpush1.msra.mxu0 0.0
  %202 = vmatprep.subr.mxu0 0.0
  %203 = vmatpush1.msra.mxu0 0.0
  %204 = vmatprep.subr.mxu0 0.0
  %205 = vmatpush1.msra.mxu0 0.0
  %206 = vmatprep.subr.mxu0 0.0
  %207 = vmatpush1.msra.mxu0 0.0
  %208 = vmatprep.subr.mxu0 0.0
  %209 = vmatpush1.msra.mxu0 0.0
  %210 = vmatprep.subr.mxu0 0.0
  %211 = vmatpush1.msra.mxu0 0.0
  %212 = vmatprep.subr.mxu0 0.0
  %213 = vmatpush1.msra.mxu0 0.0
  %214 = vmatprep.subr.mxu0 0.0
  %215 = vmatpush1.msra.mxu0 0.0
  %216 = vmatprep.subr.mxu0 0.0
  %217 = vmatpush1.msra.mxu0 0.0
  %218 = vmatprep.subr.mxu0 0.0
  %219 = vmatpush1.msra.mxu0 0.0
  %220 = vmatprep.subr.mxu0 0.0
  %221 = vmatpush1.msra.mxu0 0.0
  %222 = vmatprep.subr.mxu0 0.0
  %223 = vmatpush1.msra.mxu0 0.0
  %224 = vmatprep.subr.mxu0 0.0
  %225 = vmatpush1.msra.mxu0 0.0
  %226 = vmatprep.subr.mxu0 0.0
  %227 = vmatpush1.msra.mxu0 0.0
  %228 = vmatprep.subr.mxu0 0.0
  %229 = vmatpush1.msra.mxu0 0.0
  %230 = vmatprep.subr.mxu0 0.0
  %231 = vmatpush1.msra.mxu0 0.0
  %232 = vmatprep.subr.mxu0 0.0
  %233 = vmatpush1.msra.mxu0 0.0
  %234 = vmatprep.subr.mxu0 0.0
  %235 = vmatpush1.msra.mxu0 0.0
  %236 = vmatprep.subr.mxu0 0.0
  %237 = vmatpush1.msra.mxu0 0.0
  %238 = vmatprep.subr.mxu0 0.0
  %239 = vmatpush1.msra.mxu0 0.0
  %240 = vmatprep.subr.mxu0 0.0
  %241 = vmatpush1.msra.mxu0 0.0
  %242 = vmatprep.subr.mxu0 0.0
  %243 = vmatpush1.msra.mxu0 0.0
  %244 = vmatprep.subr.mxu0 0.0
  %245 = vmatpush1.msra.mxu0 0.0
  %246 = vmatprep.subr.mxu0 0.0
  %247 = vmatpush1.msra.mxu0 0.0
  %248 = vmatprep.subr.mxu0 0.0
  %249 = vmatpush1.msra.mxu0 0.0
  %250 = vmatprep.subr.mxu0 0.0
  %251 = vmatpush1.msra.mxu0 0.0
  %252 = vmatprep.subr.mxu0 0.0
  %253 = vmatpush1.msra.mxu0 0.0
  %254 = vmatprep.mubr.f32.mxu0 0.0
  %255 = vmatmul.mubr.f32.gmra.mrb[0].mxu0 %v81
  %v256 = vpop.f32.mrb[0].mxu0
  %v257 = vadd.f32 %v44, %v256
  %v258 = vpop.f32.mrb[0].mxu0
  %v259 = vadd.f32 %v44, %v258
  %260 = vmatprep.mubr.f32.mxu0 0.0
  %261 = vmatmul.mubr.f32.gmra.mrb[0].mxu0 %v84
  %v262 = vpop.f32.mrb[0].mxu0
  %v263 = vadd.f32 %v49, %v262
  %v264 = vpop.f32.mrb[0].mxu0
  %v265 = vadd.f32 %v49, %v264
  %266 = vmatprep.mubr.f32.mxu0 0.0
  %267 = vmatmul.mubr.f32.gmra.mrb[0].mxu0 %v87
  %v268 = vpop.f32.mrb[0].mxu0
  %v269 = vadd.f32 %v54, %v268
  %v270 = vpop.f32.mrb[0].mxu0
  %v271 = vadd.f32 %v54, %v270
  %272 = vmatprep.mubr.f32.mxu0 0.0
  %273 = vmatmul.mubr.f32.gmra.mrb[0].mxu0 %v90
  %v274 = vpop.f32.mrb[0].mxu0
  %v275 = vadd.f32 %v59, %v274
  %v276 = vpop.f32.mrb[0].mxu0
  %v277 = vadd.f32 %v59, %v276
  %278 = vdwg.mxu0
  %v279 = vmax.f32 %v168, 0.0
  %v280 = vmax.f32 %v170, 0.0
  %v281 = vmax.f32 %v257, 0.0
  %v282 = vmax.f32 %v259, 0.0
  %v283 = vmax.f32 %v174, 0.0
  %v284 = vmax.f32 %v176, 0.0
  %v285 = vmax.f32 %v263, 0.0
  %v286 = vmax.f32 %v265, 0.0
  %v287 = vmax.f32 %v180, 0.0
  %v288 = vmax.f32 %v182, 0.0
  %v289 = vmax.f32 %v269, 0.0
  %v290 = vmax.f32 %v271, 0.0
  %v291 = vmax.f32 %v186, 0.0
  %v292 = vmax.f32 %v188, 0.0
  %v293 = vmax.f32 %v275, 0.0
  %v294 = vmax.f32 %v277, 0.0
  %296 = vset.pattern.permute.xlu0 0
  %297 = vperm.xlu0 %296, %v38
  %v298 = vpop.permute.xlu0 %297
  %vm300 = vcmask 261120
  %v302 = vsel %vm300, %v32, 0
  %304 = vmatprep.subr.mxu0 %v280
  %305 = vmatpush1.msra.mxu0 %v279
  %306 = vmatprep.subr.mxu0 %v284
  %307 = vmatpush1.msra.mxu0 %v283
  %308 = vmatprep.subr.mxu0 %v288
  %309 = vmatpush1.msra.mxu0 %v287
  %310 = vmatprep.subr.mxu0 %v292
  %311 = vmatpush1.msra.mxu0 %v291
  %312 = vmatprep.subr.mxu0 0.0
  %313 = vmatpush1.msra.mxu0 0.0
  %314 = vmatprep.subr.mxu0 0.0
  %315 = vmatpush1.msra.mxu0 0.0
  %316 = vmatprep.subr.mxu0 0.0
  %317 = vmatpush1.msra.mxu0 0.0
  %318 = vmatprep.subr.mxu0 0.0
  %319 = vmatpush1.msra.mxu0 0.0
  %320 = vmatprep.subr.mxu0 0.0
  %321 = vmatpush1.msra.mxu0 0.0
  %322 = vmatprep.subr.mxu0 0.0
  %323 = vmatpush1.msra.mxu0 0.0
  %324 = vmatprep.subr.mxu0 0.0
  %325 = vmatpush1.msra.mxu0 0.0
  %326 = vmatprep.subr.mxu0 0.0
  %327 = vmatpush1.msra.mxu0 0.0
  %328 = vmatprep.subr.mxu0 0.0
  %329 = vmatpush1.msra.mxu0 0.0
  %330 = vmatprep.subr.mxu0 0.0
  %331 = vmatpush1.msra.mxu0 0.0
  %332 = vmatprep.subr.mxu0 0.0
  %333 = vmatpush1.msra.mxu0 0.0
  %334 = vmatprep.subr.mxu0 0.0
  %335 = vmatpush1.msra.mxu0 0.0
  %336 = vmatprep.subr.mxu0 0.0
  %337 = vmatpush1.msra.mxu0 0.0
  %338 = vmatprep.subr.mxu0 0.0
  %339 = vmatpush1.msra.mxu0 0.0
  %340 = vmatprep.subr.mxu0 0.0
  %341 = vmatpush1.msra.mxu0 0.0
  %342 = vmatprep.subr.mxu0 0.0
  %343 = vmatpush1.msra.mxu0 0.0
  %344 = vmatprep.subr.mxu0 0.0
  %345 = vmatpush1.msra.mxu0 0.0
  %346 = vmatprep.subr.mxu0 0.0
  %347 = vmatpush1.msra.mxu0 0.0
  %348 = vmatprep.subr.mxu0 0.0
  %349 = vmatpush1.msra.mxu0 0.0
  %350 = vmatprep.subr.mxu0 0.0
  %351 = vmatpush1.msra.mxu0 0.0
  %352 = vmatprep.subr.mxu0 0.0
  %353 = vmatpush1.msra.mxu0 0.0
  %354 = vmatprep.subr.mxu0 0.0
  %355 = vmatpush1.msra.mxu0 0.0
  %356 = vmatprep.subr.mxu0 0.0
  %357 = vmatpush1.msra.mxu0 0.0
  %358 = vmatprep.subr.mxu0 0.0
  %359 = vmatpush1.msra.mxu0 0.0
  %360 = vmatprep.subr.mxu0 0.0
  %361 = vmatpush1.msra.mxu0 0.0
  %362 = vmatprep.subr.mxu0 0.0
  %363 = vmatpush1.msra.mxu0 0.0
  %364 = vmatprep.subr.mxu0 0.0
  %365 = vmatpush1.msra.mxu0 0.0
  %366 = vmatprep.subr.mxu0 0.0
  %367 = vmatpush1.msra.mxu0 0.0
  %368 = vmatprep.mubr.f32.mxu0 0.0
  %369 = vmatmul.mubr.f32.gmra.mrb[0].mxu0 %v302
  %v370 = vpop.f32.mrb[0].mxu0
  %v371 = vadd.f32 %v298, %v370
  %v372 = vpop.f32.mrb[0].mxu0
  %v373 = vadd.f32 %v298, %v372
  %374 = vdwg.mxu0
  %375 = vmatprep.subr.mxu0 %v282
  %376 = vmatpush1.msra.mxu0 %v281
  %377 = vmatprep.subr.mxu0 %v286
  %378 = vmatpush1.msra.mxu0 %v285
  %379 = vmatprep.subr.mxu0 %v290
  %380 = vmatpush1.msra.mxu0 %v289
  %381 = vmatprep.subr.mxu0 %v294
  %382 = vmatpush1.msra.mxu0 %v293
  %383 = vmatprep.subr.mxu0 0.0
  %384 = vmatpush1.msra.mxu0 0.0
  %385 = vmatprep.subr.mxu0 0.0
  %386 = vmatpush1.msra.mxu0 0.0
  %387 = vmatprep.subr.mxu0 0.0
  %388 = vmatpush1.msra.mxu0 0.0
  %389 = vmatprep.subr.mxu0 0.0
  %390 = vmatpush1.msra.mxu0 0.0
  %391 = vmatprep.subr.mxu0 0.0
  %392 = vmatpush1.msra.mxu0 0.0
  %393 = vmatprep.subr.mxu0 0.0
  %394 = vmatpush1.msra.mxu0 0.0
  %395 = vmatprep.subr.mxu0 0.0
  %396 = vmatpush1.msra.mxu0 0.0
  %397 = vmatprep.subr.mxu0 0.0
  %398 = vmatpush1.msra.mxu0 0.0
  %399 = vmatprep.subr.mxu0 0.0
  %400 = vmatpush1.msra.mxu0 0.0
  %401 = vmatprep.subr.mxu0 0.0
  %402 = vmatpush1.msra.mxu0 0.0
  %403 = vmatprep.subr.mxu0 0.0
  %404 = vmatpush1.msra.mxu0 0.0
  %405 = vmatprep.subr.mxu0 0.0
  %406 = vmatpush1.msra.mxu0 0.0
  %407 = vmatprep.subr.mxu0 0.0
  %408 = vmatpush1.msra.mxu0 0.0
  %409 = vmatprep.subr.mxu0 0.0
  %410 = vmatpush1.msra.mxu0 0.0
  %411 = vmatprep.subr.mxu0 0.0
  %412 = vmatpush1.msra.mxu0 0.0
  %413 = vmatprep.subr.mxu0 0.0
  %414 = vmatpush1.msra.mxu0 0.0
  %415 = vmatprep.subr.mxu0 0.0
  %416 = vmatpush1.msra.mxu0 0.0
  %417 = vmatprep.subr.mxu0 0.0
  %418 = vmatpush1.msra.mxu0 0.0
  %419 = vmatprep.subr.mxu0 0.0
  %420 = vmatpush1.msra.mxu0 0.0
  %421 = vmatprep.subr.mxu0 0.0
  %422 = vmatpush1.msra.mxu0 0.0
  %423 = vmatprep.subr.mxu0 0.0
  %424 = vmatpush1.msra.mxu0 0.0
  %425 = vmatprep.subr.mxu0 0.0
  %426 = vmatpush1.msra.mxu0 0.0
  %427 = vmatprep.subr.mxu0 0.0
  %428 = vmatpush1.msra.mxu0 0.0
  %429 = vmatprep.subr.mxu0 0.0
  %430 = vmatpush1.msra.mxu0 0.0
  %431 = vmatprep.subr.mxu0 0.0
  %432 = vmatpush1.msra.mxu0 0.0
  %433 = vmatprep.subr.mxu0 0.0
  %434 = vmatpush1.msra.mxu0 0.0
  %435 = vmatprep.subr.mxu0 0.0
  %436 = vmatpush1.msra.mxu0 0.0
  %437 = vmatprep.subr.mxu0 0.0
  %438 = vmatpush1.msra.mxu0 0.0
  %439 = vmatprep.mubr.f32.mxu0 0.0
  %440 = vmatmul.mubr.f32.gmra.mrb[0].mxu0 %v302
  %v441 = vpop.f32.mrb[0].mxu0
  %v442 = vadd.f32 %v298, %v441
  %v443 = vpop.f32.mrb[0].mxu0
  %v444 = vadd.f32 %v298, %v443
  %445 = vdwg.mxu0
  %v446 = vmax.f32 %v371, 0.0
  %v447 = vmax.f32 %v373, 0.0
  %v448 = vmax.f32 %v442, 0.0
  %v449 = vmax.f32 %v444, 0.0
  %451 = vset.pattern.permute.xlu0 0
  %452 = vperm.xlu0 %451, %v39
  %v453 = vpop.permute.xlu0 %452
  %v455 = vlaneseq
  %v456 = vshrl.u32 %v455, 7
  %v457 = vsub.s32 0, %v456
  %v458 = vrot.slane %v453, %v457
  %v460 = vsel %vm79, %v33, 0
  %v463 = vsel %vm92, %v446, 0
  %v466 = vsel %vm92, %v447, 0
  %v469 = vsel %vm92, %v448, 0
  %v472 = vsel %vm92, %v449, 0
  %474 = vmatprep.subr.mxu0 %v466
  %475 = vmatpush1.msra.mxu0 %v463
  %476 = vmatprep.subr.mxu0 0.0
  %477 = vmatpush1.msra.mxu0 0.0
  %478 = vmatprep.subr.mxu0 0.0
  %479 = vmatpush1.msra.mxu0 0.0
  %480 = vmatprep.subr.mxu0 0.0
  %481 = vmatpush1.msra.mxu0 0.0
  %482 = vmatprep.subr.mxu0 0.0
  %483 = vmatpush1.msra.mxu0 0.0
  %484 = vmatprep.subr.mxu0 0.0
  %485 = vmatpush1.msra.mxu0 0.0
  %486 = vmatprep.subr.mxu0 0.0
  %487 = vmatpush1.msra.mxu0 0.0
  %488 = vmatprep.subr.mxu0 0.0
  %489 = vmatpush1.msra.mxu0 0.0
  %490 = vmatprep.subr.mxu0 0.0
  %491 = vmatpush1.msra.mxu0 0.0
  %492 = vmatprep.subr.mxu0 0.0
  %493 = vmatpush1.msra.mxu0 0.0
  %494 = vmatprep.subr.mxu0 0.0
  %495 = vmatpush1.msra.mxu0 0.0
  %496 = vmatprep.subr.mxu0 0.0
  %497 = vmatpush1.msra.mxu0 0.0
  %498 = vmatprep.subr.mxu0 0.0
  %499 = vmatpush1.msra.mxu0 0.0
  %500 = vmatprep.subr.mxu0 0.0
  %501 = vmatpush1.msra.mxu0 0.0
  %502 = vmatprep.subr.mxu0 0.0
  %503 = vmatpush1.msra.mxu0 0.0
  %504 = vmatprep.subr.mxu0 0.0
  %505 = vmatpush1.msra.mxu0 0.0
  %506 = vmatprep.subr.mxu0 0.0
  %507 = vmatpush1.msra.mxu0 0.0
  %508 = vmatprep.subr.mxu0 0.0
  %509 = vmatpush1.msra.mxu0 0.0
  %510 = vmatprep.subr.mxu0 0.0
  %511 = vmatpush1.msra.mxu0 0.0
  %512 = vmatprep.subr.mxu0 0.0
  %513 = vmatpush1.msra.mxu0 0.0
  %514 = vmatprep.subr.mxu0 0.0
  %515 = vmatpush1.msra.mxu0 0.0
  %516 = vmatprep.subr.mxu0 0.0
  %517 = vmatpush1.msra.mxu0 0.0
  %518 = vmatprep.subr.mxu0 0.0
  %519 = vmatpush1.msra.mxu0 0.0
  %520 = vmatprep.subr.mxu0 0.0
  %521 = vmatpush1.msra.mxu0 0.0
  %522 = vmatprep.subr.mxu0 0.0
  %523 = vmatpush1.msra.mxu0 0.0
  %524 = vmatprep.subr.mxu0 0.0
  %525 = vmatpush1.msra.mxu0 0.0
  %526 = vmatprep.subr.mxu0 0.0
  %527 = vmatpush1.msra.mxu0 0.0
  %528 = vmatprep.subr.mxu0 0.0
  %529 = vmatpush1.msra.mxu0 0.0
  %530 = vmatprep.subr.mxu0 0.0
  %531 = vmatpush1.msra.mxu0 0.0
  %532 = vmatprep.subr.mxu0 0.0
  %533 = vmatpush1.msra.mxu0 0.0
  %534 = vmatprep.subr.mxu0 0.0
  %535 = vmatpush1.msra.mxu0 0.0
  %536 = vmatprep.subr.mxu0 0.0
  %537 = vmatpush1.msra.mxu0 0.0
  %538 = vmatprep.mubr.f32.mxu0 0.0
  %539 = vmatmul.mubr.f32.gmra.mrb[0].mxu0 %v460
  %v540 = vpop.f32.mrb[0].mxu0
  %v541 = vadd.f32 %v458, %v540
  %v542 = vpop.f32.mrb[0].mxu0
  %v543 = vadd.f32 %v458, %v542
  %544 = vdwg.mxu0
  %545 = vmatprep.subr.mxu0 %v472
  %546 = vmatpush1.msra.mxu0 %v469
  %547 = vmatprep.subr.mxu0 0.0
  %548 = vmatpush1.msra.mxu0 0.0
  %549 = vmatprep.subr.mxu0 0.0
  %550 = vmatpush1.msra.mxu0 0.0
  %551 = vmatprep.subr.mxu0 0.0
  %552 = vmatpush1.msra.mxu0 0.0
  %553 = vmatprep.subr.mxu0 0.0
  %554 = vmatpush1.msra.mxu0 0.0
  %555 = vmatprep.subr.mxu0 0.0
  %556 = vmatpush1.msra.mxu0 0.0
  %557 = vmatprep.subr.mxu0 0.0
  %558 = vmatpush1.msra.mxu0 0.0
  %559 = vmatprep.subr.mxu0 0.0
  %560 = vmatpush1.msra.mxu0 0.0
  %561 = vmatprep.subr.mxu0 0.0
  %562 = vmatpush1.msra.mxu0 0.0
  %563 = vmatprep.subr.mxu0 0.0
  %564 = vmatpush1.msra.mxu0 0.0
  %565 = vmatprep.subr.mxu0 0.0
  %566 = vmatpush1.msra.mxu0 0.0
  %567 = vmatprep.subr.mxu0 0.0
  %568 = vmatpush1.msra.mxu0 0.0
  %569 = vmatprep.subr.mxu0 0.0
  %570 = vmatpush1.msra.mxu0 0.0
  %571 = vmatprep.subr.mxu0 0.0
  %572 = vmatpush1.msra.mxu0 0.0
  %573 = vmatprep.subr.mxu0 0.0
  %574 = vmatpush1.msra.mxu0 0.0
  %575 = vmatprep.subr.mxu0 0.0
  %576 = vmatpush1.msra.mxu0 0.0
  %577 = vmatprep.subr.mxu0 0.0
  %578 = vmatpush1.msra.mxu0 0.0
  %579 = vmatprep.subr.mxu0 0.0
  %580 = vmatpush1.msra.mxu0 0.0
  %581 = vmatprep.subr.mxu0 0.0
  %582 = vmatpush1.msra.mxu0 0.0
  %583 = vmatprep.subr.mxu0 0.0
  %584 = vmatpush1.msra.mxu0 0.0
  %585 = vmatprep.subr.mxu0 0.0
  %586 = vmatpush1.msra.mxu0 0.0
  %587 = vmatprep.subr.mxu0 0.0
  %588 = vmatpush1.msra.mxu0 0.0
  %589 = vmatprep.subr.mxu0 0.0
  %590 = vmatpush1.msra.mxu0 0.0
  %591 = vmatprep.subr.mxu0 0.0
  %592 = vmatpush1.msra.mxu0 0.0
  %593 = vmatprep.subr.mxu0 0.0
  %594 = vmatpush1.msra.mxu0 0.0
  %595 = vmatprep.subr.mxu0 0.0
  %596 = vmatpush1.msra.mxu0 0.0
  %597 = vmatprep.subr.mxu0 0.0
  %598 = vmatpush1.msra.mxu0 0.0
  %599 = vmatprep.subr.mxu0 0.0
  %600 = vmatpush1.msra.mxu0 0.0
  %601 = vmatprep.subr.mxu0 0.0
  %602 = vmatpush1.msra.mxu0 0.0
  %603 = vmatprep.subr.mxu0 0.0
  %604 = vmatpush1.msra.mxu0 0.0
  %605 = vmatprep.subr.mxu0 0.0
  %606 = vmatpush1.msra.mxu0 0.0
  %607 = vmatprep.subr.mxu0 0.0
  %608 = vmatpush1.msra.mxu0 0.0
  %609 = vmatprep.mubr.f32.mxu0 0.0
  %610 = vmatmul.mubr.f32.gmra.mrb[0].mxu0 %v460
  %v611 = vpop.f32.mrb[0].mxu0
  %v612 = vadd.f32 %v458, %v611
  %v613 = vpop.f32.mrb[0].mxu0
  %v614 = vadd.f32 %v458, %v613
  %615 = vdwg.mxu0
  %v620 = vcombine.low %v541, %v543
  %v621 = vcombine.low %v612, %v614
  %v623 = vunpack.c.l.s4 1966171168
  %v624 = vunpack.c.0.s8 %v623
  %v625 = vlaneseq
  %v626 = vshrl.u32 %v625, 7
  %v627 = vsub.s32 %v624, %v626
  %v628 = vrot.slane %v620, %v627
  %v630 = vunpack.c.l.s4 1966171168
  %v631 = vunpack.c.0.s8 %v630
  %v632 = vlaneseq
  %v633 = vshrl.u32 %v632, 7
  %v634 = vsub.s32 %v631, %v633
  %v635 = vrot.slane %v621, %v634
  %v636 = vcombine.low %v628, %v635
  %v638 = vunpack.c.l.s4 1966171168
  %v639 = vunpack.c.0.s8 %v638
  %v640 = vlaneseq
  %v641 = vshrl.u32 %v640, 7
  %v642 = vsub.s32 %v639, %v641
  %v643 = vrot.slane %v636, %v642
  %v645 = vlaneseq
  %vm646 = vcmp.ge.s32.totalorder %v645, 0
  %vm647 = vcmp.lt.s32.totalorder %v645, 512
  %vm648 = vmand %vm646, %vm647
  %649 = vst.msk [vmem:[%s7] sm:$0xf] %vm648, %v643
  // Predicated region
  $region30: #{linear_relu_noact.1} parent=0 // pred_check
    _
  $region31: #{linear_relu_noact.1} parent=0 // pred_check_branch
    %651 = sbr.rel (0) target = $region33
  $region32: #{linear_relu_noact.1} parent=0 // pred_region
    _
  $region33: #{linear_relu_noact.1} parent=0 // pred_fallthru
    _
  // Predicated region
  $region34: #{linear_relu_noact.1} parent=0 // pred_check
    _
  $region35: #{linear_relu_noact.1} parent=0 // pred_check_branch
    %653 = sbr.rel (0) target = $region37
  $region36: #{linear_relu_noact.1} parent=0 // pred_region
    _
  $region37: #{linear_relu_noact.1} parent=0 // pred_fallthru
    _

</llo_original>
